<compile_context>
chip_gen: v7x
topology: tpu7x:2x2x1
jax: 0.10.0
libtpu: 0.0.40
codegen_flags: <defaults>
</compile_context>

<pallas_src>
import functools

import jax
import jax.numpy as jnp
from jax.experimental import pallas as pl
from jax.experimental.pallas import tpu as pltpu


def _round_up(v, m):
    return (v + m - 1) // m * m


def _choose_tile(req, total, min_mult):
    """Round a requested tile so it is a multiple of `min_mult` and divides the
    padded total (tiles < 128 become power-of-two divisors of 128, tiles >= 128
    become multiples of 128)."""
    t = min(int(req), _round_up(int(total), min_mult))
    t = max(min_mult, _round_up(t, min_mult))
    if t < 128:
        p = min_mult
        while p < t:
            p *= 2
        t = p
    else:
        t = _round_up(t, 128)
    return t


def _default_config():
    """(n_tile, e_tile, vmem_limit_bytes) gated on VMEM capacity."""
    cap = 64 * 1024 * 1024
    try:
        info = pltpu.get_tpu_info()
        cap = int(getattr(info, "vmem_capacity_bytes", cap))
    except Exception:
        pass
    if cap >= 96 * 1024 * 1024:          # 128-MiB parts (v5e / v6e / v5p ...)
        return 512, 1024, 96 * 1024 * 1024
    return 256, 256, 48 * 1024 * 1024    # 64-MiB parts (v7x) / unknown


def _gat_kernel(h_ref, gt_ref, phis_ref, inc_ref, rext_ref, out_ref, acc_scr,
                *, alpha, hno, n_head):
    # Grid: i = N-tile (parallel), j = E-tile (reduction, last axis).
    #   h_ref   : [N_pad, P]      bf16  extended node features (VMEM resident)
    #                             cols [0,hno)      = per-head features
    #                             cols [hno,hno+H)  = per-head ones (for div)
    #                             cols [hno+H,+2H)  = per-head phi_t
    #                             cols [.., P)      = zero pad (P % 128 == 0)
    #   gt_ref  : [e_t, N_pad]    bf16  one-hot(t) tile (padded rows all-zero)
    #   phis_ref: [e_t, H]        f32   phi_s[s] tile (padded rows zero)
    #   inc_ref : [n_t, e_t]      bf16  incidence tile
    #   rext_ref: [H, P]          f32   head->lane broadcast (0/1), zero on
    #                                   phi_t / pad columns
    #   out_ref : [n_t, P]        f32   lane-dense packed output
    j = pl.program_id(1)

    @pl.when(j == 0)
    def _():
        acc_scr[...] = jnp.zeros_like(acc_scr)

    # Gather target-node extended features: bf16 x bf16 -> f32 on the MXU.
    ht_ext = jnp.dot(gt_ref[...], h_ref[...],
                     preferred_element_type=jnp.float32)            # [e_t, P]

    # Attention logit (no Gs gather): phi_s streamed, phi_t from the gather.
    phi_t = ht_ext[:, hno + n_head:hno + 2 * n_head]                # [e_t, H]
    logit = phis_ref[...] + phi_t
    logit = jnp.where(logit > 0, logit, alpha * logit)              # leaky relu
    # NOTE: matches the reference (no max-subtraction); exp can overflow for
    # extreme logits exactly like the PyTorch module.
    w = jnp.exp(logit)                                              # EUP, [e_t, H]

    # Broadcast per-head w across its n_out feature lanes + its div lane.
    # (Tiny K=H contraction; only worth moving off the MXU if MXU-bound.)
    w_ext = jnp.dot(w, rext_ref[...],
                    preferred_element_type=jnp.float32)             # [e_t, P]

    # Fused agg|div aggregation: bf16 x bf16 -> f32 incidence matmul.
    prod = (w_ext * ht_ext).astype(jnp.bfloat16)
    acc_scr[...] += jnp.dot(inc_ref[...], prod,
                            preferred_element_type=jnp.float32)     # [n_t, P]

    @pl.when(j == pl.num_programs(1) - 1)
    def _():
        div = acc_scr[:, hno:hno + n_head]                          # [n_t, H]
        div_b = jnp.dot(div, rext_ref[...],
                        preferred_element_type=jnp.float32)         # [n_t, P]
        # Guard: padded rows / pad lanes have div == 0 -> output 0, not NaN.
        inv = pl.reciprocal(jnp.where(div_b > 0, div_b, 1.0), approx=True)
        out_ref[...] = (acc_scr[...] * inv).astype(out_ref.dtype)


def gat_layer(x, s, t, inc, W, b, a, *, alpha=0.2, concat=True,
              n_tile=None, e_tile=None, vmem_limit_bytes=None):
    """Multi-head GAT layer (forward, eval mode).

    x  : [N, n_in]         node features
    s,t: [E] int32         edge endpoints
    inc: [N, E]            dense incidence matrix I (0/1)
    W  : [H, n_in, n_out]  per-head linear weights (transposed vs torch)
    b  : [H, 1, n_out]     per-head linear bias
    a  : [H, 2*n_out, 1]   per-head attention weights
    """
    x = jnp.asarray(x, jnp.float32)
    N, n_in = x.shape
    E = int(s.shape[0])
    H, _, n_out = W.shape
    hno = H * n_out
    P = _round_up(hno + 2 * H, 128)          # lane-dense packed width

    d_n, d_e, d_v = _default_config()
    n_tile = d_n if n_tile is None else n_tile
    e_tile = d_e if e_tile is None else e_tile
    vmem_limit = d_v if vmem_limit_bytes is None else vmem_limit_bytes

    n_tile = _choose_tile(n_tile, N, 16)     # bf16 sublane multiple
    N_pad = _round_up(N, max(n_tile, 128))   # lane-dense gather contraction
    # Cap e_tile so the double-buffered Gt tile stays within ~1/3 of budget.
    max_e = ((vmem_limit // 3) // (4 * N_pad)) // 128 * 128
    e_tile = _choose_tile(min(e_tile, max(128, max_e)), E, 128)
    E_pad = _round_up(E, e_tile)

    # ---- hoisted projection (plain XLA; O(N) work, tiny vs aggregation) ----
    W32 = jnp.asarray(W, jnp.float32)
    b32 = jnp.asarray(b, jnp.float32)
    a32 = jnp.asarray(a, jnp.float32)
    W_all = jnp.transpose(W32, (1, 0, 2)).reshape(n_in, hno)   # col = h*n_out+c
    b_all = b32[:, 0, :].reshape(1, hno)
    h = x @ W_all + b_all                                      # [N, hno] f32
    h3 = h.reshape(N, H, n_out)
    a_s = a32[:, :n_out, 0]                                    # [H, n_out]
    a_t = a32[:, n_out:, 0]
    phi_s = jnp.einsum("nhd,hd->nh", h3, a_s)                  # [N, H]
    phi_t = jnp.einsum("nhd,hd->nh", h3, a_t)                  # [N, H]

    # Extended node features [ h | 1 per head | phi_t per head | 0 pad ], bf16.
    h_ext = jnp.zeros((N_pad, P), jnp.float32)
    h_ext = h_ext.at[:N, :hno].set(h)
    h_ext = h_ext.at[:N, hno:hno + H].set(1.0)
    h_ext = h_ext.at[:N, hno + H:hno + 2 * H].set(phi_t)
    h_ext = h_ext.astype(jnp.bfloat16)

    s = jnp.asarray(s, jnp.int32)
    t = jnp.asarray(t, jnp.int32)
    # Per-edge source-logit contribution (tiny [E, H]); padded rows zero.
    phis_e = jnp.zeros((E_pad, H), jnp.float32).at[:E].set(phi_s[s])
    # Target gather one-hot (exact 0/1 in bf16); padded rows all-zero so they
    # contribute nothing regardless of their (w = exp(0) = 1) weight.
    gt = jnp.zeros((E_pad, N_pad), jnp.bfloat16).at[:E].set(
        jax.nn.one_hot(t, N_pad, dtype=jnp.bfloat16))
    inc_p = jnp.zeros((N_pad, E_pad), jnp.bfloat16).at[:N, :E].set(
        jnp.asarray(inc, jnp.float32).astype(jnp.bfloat16))

    # Head -> lane broadcast matrix (exact 0/1): feature lanes + the div lane;
    # zero on the phi_t and pad lanes (keeps them zero in the accumulator).
    eyeH = jnp.eye(H, dtype=jnp.float32)
    R_ext = jnp.zeros((H, P), jnp.float32)
    R_ext = R_ext.at[:, :hno].set(jnp.repeat(eyeH, n_out, axis=1))
    R_ext = R_ext.at[:, hno:hno + H].set(eyeH)

    grid = (N_pad // n_tile, E_pad // e_tile)
    kernel = functools.partial(_gat_kernel, alpha=float(alpha), hno=hno,
                               n_head=H)

    out = pl.pallas_call(
        kernel,
        out_shape=jax.ShapeDtypeStruct((N_pad, P), jnp.float32),
        grid=grid,
        in_specs=[
            pl.BlockSpec((N_pad, P), lambda i, j: (0, 0)),         # h_ext (resident)
            pl.BlockSpec((e_tile, N_pad), lambda i, j: (j, 0)),    # Gt tile
            pl.BlockSpec((e_tile, H), lambda i, j: (j, 0)),        # phi_s[s] tile
            pl.BlockSpec((n_tile, e_tile), lambda i, j: (i, j)),   # inc tile
            pl.BlockSpec((H, P), lambda i, j: (0, 0)),             # R_ext
        ],
        out_specs=pl.BlockSpec((n_tile, P), lambda i, j: (i, 0)),  # lane-dense
        scratch_shapes=[pltpu.VMEM((n_tile, P), jnp.float32)],     # [agg|div] acc
        compiler_params=pltpu.CompilerParams(
            dimension_semantics=("parallel", "arbitrary"),
            vmem_limit_bytes=int(vmem_limit)),
    )(h_ext, gt, phis_e, inc_p, R_ext)

    out = out[:N, :hno]
    if concat:
        # Already packed head-major along lanes == torch.cat(out, dim=-1).
        return out
    # torch.mean(torch.stack(out), dim=0)
    return out.reshape(N, H, n_out).mean(axis=1)


def gat_ref(x, s, t, inc, W, b, a, *, alpha=0.2, concat=True):
    """Pure-JAX f32 reference mirroring the PyTorch forward."""
    H = W.shape[0]
    outs = []
    for h in range(H):
        xh = x @ W[h] + b[h, 0]
        hs = xh[s]
        ht = xh[t]
        logit = jnp.concatenate([hs, ht], axis=-1) @ a[h]
        logit = jnp.where(logit > 0, logit, alpha * logit)
        w = jnp.exp(logit)
        div = inc @ w
        agg = inc @ (w * ht)
        outs.append(agg / div)
    if concat:
        return jnp.concatenate(outs, axis=-1)
    return jnp.mean(jnp.stack(outs), axis=0)


if __name__ == "__main__":
    key = jax.random.PRNGKey(0)
    N, n_in, n_out, H = 48, 8, 16, 2
    alpha = 0.2

    k_x, k_s, k_t, k_w, k_a = jax.random.split(key, 5)
    x = jax.random.normal(k_x, (N, n_in), dtype=jnp.float32)

    # Edge list: self-loops (so every node has div > 0) plus random edges.
    # E = 256 so e_tile=128 exercises 2 edge tiles.
    n_rand = 208
    s = jnp.concatenate([
        jnp.arange(N, dtype=jnp.int32),
        jax.random.randint(k_s, (n_rand,), 0, N, dtype=jnp.int32)])
    t = jnp.concatenate([
        jnp.arange(N, dtype=jnp.int32),
        jax.random.randint(k_t, (n_rand,), 0, N, dtype=jnp.int32)])

    inc = jax.nn.one_hot(s, N, dtype=jnp.float32).T        # I: [N, E]

    # Deterministic synthetic parameter init (shapes follow module __init__).
    bound = 1.414 * (6.0 / (n_in + n_out)) ** 0.5
    W = jax.random.uniform(k_w, (H, n_in, n_out), jnp.float32, -bound, bound)
    b = jnp.zeros((H, 1, n_out), jnp.float32)
    # PyTorch zero-inits attn.weight; use small random values to exercise it.
    a = 0.1 * jax.random.normal(k_a, (H, 2 * n_out, 1), dtype=jnp.float32)

    # Explicit small tiles -> exercises an 8 x 2 grid with accumulation.
    out_cat = gat_layer(x, s, t, inc, W, b, a, alpha=alpha, concat=True,
                        n_tile=16, e_tile=128)
    out_cat = jax.block_until_ready(out_cat)
    ref_cat = gat_ref(x, s, t, inc, W, b, a, alpha=alpha, concat=True)
    assert out_cat.shape == (N, H * n_out), out_cat.shape
    # bf16 feature / product precision in the kernel -> relaxed tolerance.
    assert jnp.allclose(out_cat, ref_cat, rtol=2e-2, atol=2e-2), \
        float(jnp.max(jnp.abs(out_cat - ref_cat)))

    # Auto-tuned tiles (hardware-gated defaults) for the mean variant.
    out_mean = gat_layer(x, s, t, inc, W, b, a, alpha=alpha, concat=False)
    out_mean = jax.block_until_ready(out_mean)
    ref_mean = gat_ref(x, s, t, inc, W, b, a, alpha=alpha, concat=False)
    assert jnp.allclose(out_mean, ref_mean, rtol=2e-2, atol=2e-2), \
        float(jnp.max(jnp.abs(out_mean - ref_mean)))

    print("KERNEL_OK")
</pallas_src>

<mosaic_0001>
module attributes {stable_mosaic.version = 11 : i64} {
  func.func @_gat_kernel(%arg0: i32, %arg1: i32, %arg2: memref<128x128xbf16, #tpu.memory_space<vmem>>, %arg3: memref<128x128xbf16, #tpu.memory_space<vmem>>, %arg4: memref<128x2xf32, #tpu.memory_space<vmem>>, %arg5: memref<16x128xbf16, #tpu.memory_space<vmem>>, %arg6: memref<2x128xf32, #tpu.memory_space<vmem>>, %arg7: memref<16x128xf32, #tpu.memory_space<vmem>>, %arg8: memref<16x128xf32, #tpu.memory_space<vmem>>) attributes {dimension_semantics = [#tpu.dimension_semantics<parallel>, #tpu.dimension_semantics<arbitrary>], iteration_bounds = array<i64: 8, 2>, scalar_prefetch = 0 : i64, scratch_operands = 1 : i64, tpu.core_type = #tpu.core_type<tc>, window_params = [{pipeline_mode = #tpu.pipeline_mode<synchronous>, transform_indices = @transform_0, window_bounds = array<i64: 128, 128>}, {transform_indices = @transform_1, window_bounds = array<i64: 128, 128>}, {transform_indices = @transform_2, window_bounds = array<i64: 128, 2>}, {transform_indices = @transform_3, window_bounds = array<i64: 16, 128>}, {pipeline_mode = #tpu.pipeline_mode<synchronous>, transform_indices = @transform_4, window_bounds = array<i64: 2, 128>}, {transform_indices = @transform_5, window_bounds = array<i64: 16, 128>}]} {
    %c0_i32 = arith.constant 0 : i32
    %0 = arith.cmpi eq, %arg1, %c0_i32 : i32
    %1 = arith.extui %0 : i1 to i32
    %c0_i32_0 = arith.constant 0 : i32
    %2 = arith.cmpi ne, %1, %c0_i32_0 : i32
    scf.if %2 {
      %cst_19 = arith.constant 0.000000e+00 : f32
      %27 = vector.broadcast %cst_19 : f32 to vector<16x128xf32>
      %c0_20 = arith.constant 0 : index
      %c0_21 = arith.constant 0 : index
      %28 = vector.load %arg8[%c0_20, %c0_21] : memref<16x128xf32, #tpu.memory_space<vmem>>, vector<16x128xf32>
      tpu.vector_store %arg8[%c0_20, %c0_21], %27 {strides = array<i32>} : memref<16x128xf32, #tpu.memory_space<vmem>>, vector<16x128xf32>,
    } else {
    }
    %c0 = arith.constant 0 : index
    %c0_1 = arith.constant 0 : index
    %3 = vector.load %arg3[%c0, %c0_1] : memref<128x128xbf16, #tpu.memory_space<vmem>>, vector<128x128xbf16>
    %c0_2 = arith.constant 0 : index
    %c0_3 = arith.constant 0 : index
    %4 = vector.load %arg2[%c0_2, %c0_3] : memref<128x128xbf16, #tpu.memory_space<vmem>>, vector<128x128xbf16>
    %cst = arith.constant dense<0.000000e+00> : vector<128x128xf32>
    %5 = tpu.matmul %3, %4, %cst {dimension_numbers = #tpu.dot_dimension_numbers<[1], [0], [0], [1], [0, 0, 1, 1], [], []>} : vector<128x128xbf16>, vector<128x128xbf16>, vector<128x128xf32> -> vector<128x128xf32>
    %6 = vector.extract_strided_slice %5 {offsets = [0, 34], sizes = [128, 2], strides = [1, 1]} : vector<128x128xf32> to vector<128x2xf32>
    %c0_4 = arith.constant 0 : index
    %c0_5 = arith.constant 0 : index
    %7 = vector.load %arg4[%c0_4, %c0_5] : memref<128x2xf32, #tpu.memory_space<vmem>>, vector<128x2xf32>
    %8 = arith.addf %7, %6 : vector<128x2xf32>
    %cst_6 = arith.constant 0.000000e+00 : f32
    %9 = vector.broadcast %cst_6 : f32 to vector<128x2xf32>
    %10 = arith.cmpf ogt, %8, %9 : vector<128x2xf32>
    %cst_7 = arith.constant 2.000000e-01 : f32
    %11 = vector.broadcast %cst_7 : f32 to vector<128x2xf32>
    %12 = arith.mulf %11, %8 : vector<128x2xf32>
    %13 = arith.select %10, %8, %12 : vector<128x2xi1>, vector<128x2xf32>
    %14 = math.exp %13 : vector<128x2xf32>
    %c0_8 = arith.constant 0 : index
    %c0_9 = arith.constant 0 : index
    %15 = vector.load %arg6[%c0_8, %c0_9] : memref<2x128xf32, #tpu.memory_space<vmem>>, vector<2x128xf32>
    %cst_10 = arith.constant dense<0.000000e+00> : vector<128x128xf32>
    %16 = tpu.matmul %14, %15, %cst_10 {dimension_numbers = #tpu.dot_dimension_numbers<[1], [0], [0], [1], [0, 0, 1, 1], [], []>} : vector<128x2xf32>, vector<2x128xf32>, vector<128x128xf32> -> vector<128x128xf32>
    %17 = arith.mulf %16, %5 : vector<128x128xf32>
    %18 = arith.truncf %17 : vector<128x128xf32> to vector<128x128xbf16>
    %c0_11 = arith.constant 0 : index
    %c0_12 = arith.constant 0 : index
    %19 = vector.load %arg8[%c0_11, %c0_12] : memref<16x128xf32, #tpu.memory_space<vmem>>, vector<16x128xf32>
    %c0_13 = arith.constant 0 : index
    %c0_14 = arith.constant 0 : index
    %20 = vector.load %arg5[%c0_13, %c0_14] : memref<16x128xbf16, #tpu.memory_space<vmem>>, vector<16x128xbf16>
    %cst_15 = arith.constant dense<0.000000e+00> : vector<16x128xf32>
    %21 = tpu.matmul %20, %18, %cst_15 {dimension_numbers = #tpu.dot_dimension_numbers<[1], [0], [0], [1], [0, 0, 1, 1], [], []>} : vector<16x128xbf16>, vector<128x128xbf16>, vector<16x128xf32> -> vector<16x128xf32>
    %22 = arith.addf %19, %21 : vector<16x128xf32>
    %c0_16 = arith.constant 0 : index
    %c0_17 = arith.constant 0 : index
    %23 = vector.load %arg8[%c0_16, %c0_17] : memref<16x128xf32, #tpu.memory_space<vmem>>, vector<16x128xf32>
    tpu.vector_store %arg8[%c0_16, %c0_17], %22 {strides = array<i32>} : memref<16x128xf32, #tpu.memory_space<vmem>>, vector<16x128xf32>,
    %c1_i32 = arith.constant 1 : i32
    %24 = arith.cmpi eq, %arg1, %c1_i32 : i32
    %25 = arith.extui %24 : i1 to i32
    %c0_i32_18 = arith.constant 0 : i32
    %26 = arith.cmpi ne, %25, %c0_i32_18 : i32
    scf.if %26 {
      %c0_19 = arith.constant 0 : index
      %c32 = arith.constant 32 : index
      %27 = vector.load %arg8[%c0_19, %c32] : memref<16x128xf32, #tpu.memory_space<vmem>>, vector<16x2xf32>
      %c0_20 = arith.constant 0 : index
      %c0_21 = arith.constant 0 : index
      %28 = vector.load %arg6[%c0_20, %c0_21] : memref<2x128xf32, #tpu.memory_space<vmem>>, vector<2x128xf32>
      %cst_22 = arith.constant dense<0.000000e+00> : vector<16x128xf32>
      %29 = tpu.matmul %27, %28, %cst_22 {dimension_numbers = #tpu.dot_dimension_numbers<[1], [0], [0], [1], [0, 0, 1, 1], [], []>} : vector<16x2xf32>, vector<2x128xf32>, vector<16x128xf32> -> vector<16x128xf32>
      %cst_23 = arith.constant 0.000000e+00 : f32
      %30 = vector.broadcast %cst_23 : f32 to vector<16x128xf32>
      %31 = arith.cmpf ogt, %29, %30 : vector<16x128xf32>
      %cst_24 = arith.constant 1.000000e+00 : f32
      %32 = vector.broadcast %cst_24 : f32 to vector<16x128xf32>
      %33 = arith.select %31, %29, %32 : vector<16x128xi1>, vector<16x128xf32>
      %34 = tpu.reciprocal %33 {approx = true} : vector<16x128xf32> -> vector<16x128xf32>
      %c0_25 = arith.constant 0 : index
      %c0_26 = arith.constant 0 : index
      %35 = vector.load %arg8[%c0_25, %c0_26] : memref<16x128xf32, #tpu.memory_space<vmem>>, vector<16x128xf32>
      %36 = arith.mulf %35, %34 : vector<16x128xf32>
      %c0_27 = arith.constant 0 : index
      %c0_28 = arith.constant 0 : index
      %37 = vector.load %arg7[%c0_27, %c0_28] : memref<16x128xf32, #tpu.memory_space<vmem>>, vector<16x128xf32>
      tpu.vector_store %arg7[%c0_27, %c0_28], %36 {strides = array<i32>} : memref<16x128xf32, #tpu.memory_space<vmem>>, vector<16x128xf32>,
    } else {
    }
    return
  }
  func.func @transform_0(%arg0: i32, %arg1: i32) -> (i32, i32) {
    %c0_i32 = arith.constant 0 : i32
    %c0_i32_0 = arith.constant 0 : i32
    %c0_i32_1 = arith.constant 0 : i32
    return %c0_i32, %c0_i32_0 : i32, i32
  }
  func.func @transform_1(%arg0: i32, %arg1: i32) -> (i32, i32) {
    %c0_i32 = arith.constant 0 : i32
    %c0_i32_0 = arith.constant 0 : i32
    return %arg1, %c0_i32 : i32, i32
  }
  func.func @transform_2(%arg0: i32, %arg1: i32) -> (i32, i32) {
    %c0_i32 = arith.constant 0 : i32
    %c0_i32_0 = arith.constant 0 : i32
    return %arg1, %c0_i32 : i32, i32
  }
  func.func @transform_3(%arg0: i32, %arg1: i32) -> (i32, i32) {
    %c0_i32 = arith.constant 0 : i32
    return %arg0, %arg1 : i32, i32
  }
  func.func @transform_4(%arg0: i32, %arg1: i32) -> (i32, i32) {
    %c0_i32 = arith.constant 0 : i32
    %c0_i32_0 = arith.constant 0 : i32
    %c0_i32_1 = arith.constant 0 : i32
    return %c0_i32, %c0_i32_0 : i32, i32
  }
  func.func @transform_5(%arg0: i32, %arg1: i32) -> (i32, i32) {
    %c0_i32 = arith.constant 0 : i32
    %c0_i32_0 = arith.constant 0 : i32
    return %arg0, %c0_i32 : i32, i32
  }
}

</mosaic_0001>

<llo_original>
// kernel: tpu_custom_call.1
$region0: #{tpu_custom_call.1}
  #allocation0 [shape = 'u32[]', space=smem, size = 0x4, offset = 0x4, fixed_abs, tag = 'smem constant byte address 0x4 - core index']
  #allocation1 [shape = 'u32[144,128]{1,0:T(1,128)}', space=vmem, size = 0x12000, scoped, tag = 'internal scratch']
  #allocation2 [shape = 'f32[16,128]{1,0:T(8,128)}', space=vmem, size = 0x2000, scoped, tag = 'scratch operand']
  %s0 = inlined_call_operand.hbm [shape: bf16[128,128], index: 0, kind: input, shape index: {}]
  %s1 = inlined_call_operand.vmem [shape: bf16[256,128], index: 1, kind: input, shape index: {}]
  %s2 = inlined_call_operand.vmem [shape: f32[256,2], index: 2, kind: input, shape index: {}]
  %s3 = inlined_call_operand.vmem [shape: bf16[128,256], index: 3, kind: input, shape index: {}]
  %s4 = inlined_call_operand.vmem [shape: f32[2,128], index: 4, kind: input, shape index: {}]
  %s5 = inlined_call_operand.hbm [shape: f32[128,128], index: 5, kind: output, shape index: {}]
  %s6 = sld [smem:[#allocation0]]
  $region106: #{tpu_custom_call.1} parent=0
    _
  %s8 = ssub.s32 1, %s6
  %s9 = scalar_select 0, %s8, %s6
  $region1: #{tpu_custom_call.1} parent=0
    #allocation3 [shape = 'u8[32768]{0}', space=vmem, size = 0x8000, scoped, tag = 'input window, operand 0, single buffered']
    #allocation4 [shape = 's32[2]{0}', space=sflag, size = 0x8, scoped, tag = 'scoped memory for tpu_custom_call.1']
    #allocation5 [shape = 's32[2]{0}', space=sflag, size = 0x8, scoped, tag = 'scoped memory for tpu_custom_call.1']
    #allocation6 [shape = 'u8[8192]{0}', space=vmem, size = 0x2000, scoped, tag = 'input window, operand 3']
    #allocation7 [shape = 'u8[16384]{0}', space=vmem, size = 0x4000, scoped, tag = 'output window, operand 0']
    %10 = vsyncpa [#allocation4], 0
    %11 = vsyncpa [#allocation5], 0
    %s12 = scalar_lea.sflag [#allocation5], 1
    %13 = vsyncpa %s12, 0
    loop: start=0, step=1, limit=18
    $region2: #{tpu_custom_call.1} parent=1 // loop_pre_header
      _
    $region3: #{tpu_custom_call.1} parent=1 // loop_header
      %s15 = sphi 0, %s19
      %p16 = scmp.ge.s32.totalorder %s15, 18
      %s22 = sphi 0, %s34
      %s23 = sphi 0, %s30
      %s24 = sphi 0, %s22
      %s25 = sphi 0, %s23
      %s26 = sphi 0, %s24
      %s27 = sphi 0, %s25
      %s35 = sphi 0, %s35
      %s37 = sphi 0, %s35
      %s38 = sphi 0, %s37
      %s52 = sphi 0, %s38
      %s58 = sphi 0, %s60
      %s61 = sphi 0, %s58
      %s62 = sphi 0, %s61
      %s78 = sphi 0, %s62
      %s84 = sphi 0, %s86
      %s87 = sphi 0, %s84
      %s88 = sphi 0, %s87
      %s104 = sphi 0, %s88
      %s112 = sphi 0, %s114
      %s115 = sphi 0, %s112
      %s116 = sphi 0, %s115
      %s132 = sphi 0, %s116
      %s136 = sphi 0, %s136
      %s138 = sphi 0, %s136
      %s139 = sphi 0, %s138
      %s153 = sphi 0, %s139
      %s159 = sphi 0, %s161
      %s162 = sphi 0, %s159
      %s163 = sphi 0, %s162
      %s179 = sphi 0, %s163
    $region4: #{tpu_custom_call.1} parent=1 // loop_header_branch
      %18 = sbr.rel (%p16) target = $region8
    $region5: #{tpu_custom_call.1} parent=1 // loop_body
      %s20 = ssub.s32 %s15, 1
      %s21 = ssub.s32 %s15, 2
      %s28 = sadd.s32 1, %s23
      %p29 = scmp.ge.s32.totalorder %s28, 2
      %s30 = scalar_select %p29, 0, %s28
      %s31 = sadd.s32 1, %s22
      %s32 = scalar_select %p29, %s31, %s22
      %p33 = scmp.ge.s32.totalorder %s32, 8
      %s34 = scalar_select %p33, 0, %s32
      %s36 = sadd.s32 %s35, 1
      %p39 = scmp.eq.s32.totalorder %s15, 15
      %p40 = scmp.ne.s32.totalorder %s35, %s37
      %p41 = scmp.eq.s32.totalorder %s15, 0
      %p42 = por %p40, %p41
      %p43 = scmp.ne.s32.totalorder %s35, %s37
      %p44 = scmp.eq.s32.totalorder %s20, 15
      %p45 = por %p43, %p44
      %p46 = scmp.ne.s32.totalorder %s37, %s38
      %p47 = scmp.eq.s32.totalorder %s20, 0
      %p48 = por %p46, %p47
      %p49 = scmp.ne.s32.totalorder %s37, %s38
      %p50 = scmp.eq.s32.totalorder %s21, 15
      %p51 = por %p49, %p50
      %p53 = scmp.ne.s32.totalorder %s38, %s52
      %p54 = scmp.eq.s32.totalorder %s21, 0
      %p55 = por %p53, %p54
      %s56 = ssub.s32 %s23, %s30
      %p57 = scmp.eq.s32.totalorder %s56, 0
      %s59 = sadd.s32 %s58, 1
      %s60 = scalar_select %p57, %s58, %s59
      %p63 = pneg %p57
      %p64 = scmp.eq.s32.totalorder %s15, 15
      %p65 = por %p63, %p64
      %p66 = scmp.ne.s32.totalorder %s58, %s61
      %p67 = scmp.eq.s32.totalorder %s15, 0
      %p68 = por %p66, %p67
      %p69 = scmp.ne.s32.totalorder %s58, %s61
      %p70 = scmp.eq.s32.totalorder %s20, 15
      %p71 = por %p69, %p70
      %p72 = scmp.ne.s32.totalorder %s61, %s62
      %p73 = scmp.eq.s32.totalorder %s20, 0
      %p74 = por %p72, %p73
      %p75 = scmp.ne.s32.totalorder %s61, %s62
      %p76 = scmp.eq.s32.totalorder %s21, 15
      %p77 = por %p75, %p76
      %p79 = scmp.ne.s32.totalorder %s62, %s78
      %p80 = scmp.eq.s32.totalorder %s21, 0
      %p81 = por %p79, %p80
      %s82 = ssub.s32 %s23, %s30
      %p83 = scmp.eq.s32.totalorder %s82, 0
      %s85 = sadd.s32 %s84, 1
      %s86 = scalar_select %p83, %s84, %s85
      %p89 = pneg %p83
      %p90 = scmp.eq.s32.totalorder %s15, 15
      %p91 = por %p89, %p90
      %p92 = scmp.ne.s32.totalorder %s84, %s87
      %p93 = scmp.eq.s32.totalorder %s15, 0
      %p94 = por %p92, %p93
      %p95 = scmp.ne.s32.totalorder %s84, %s87
      %p96 = scmp.eq.s32.totalorder %s20, 15
      %p97 = por %p95, %p96
      %p98 = scmp.ne.s32.totalorder %s87, %s88
      %p99 = scmp.eq.s32.totalorder %s20, 0
      %p100 = por %p98, %p99
      %p101 = scmp.ne.s32.totalorder %s87, %s88
      %p102 = scmp.eq.s32.totalorder %s21, 15
      %p103 = por %p101, %p102
      %p105 = scmp.ne.s32.totalorder %s88, %s104
      %p106 = scmp.eq.s32.totalorder %s21, 0
      %p107 = por %p105, %p106
      %s108 = ssub.s32 %s22, %s34
      %s109 = ssub.s32 %s23, %s30
      %s110 = sor.u32 %s108, %s109
      %p111 = scmp.eq.s32.totalorder %s110, 0
      %s113 = sadd.s32 %s112, 1
      %s114 = scalar_select %p111, %s112, %s113
      %p117 = pneg %p111
      %p118 = scmp.eq.s32.totalorder %s15, 15
      %p119 = por %p117, %p118
      %p120 = scmp.ne.s32.totalorder %s112, %s115
      %p121 = scmp.eq.s32.totalorder %s15, 0
      %p122 = por %p120, %p121
      %p123 = scmp.ne.s32.totalorder %s112, %s115
      %p124 = scmp.eq.s32.totalorder %s20, 15
      %p125 = por %p123, %p124
      %p126 = scmp.ne.s32.totalorder %s115, %s116
      %p127 = scmp.eq.s32.totalorder %s20, 0
      %p128 = por %p126, %p127
      %p129 = scmp.ne.s32.totalorder %s115, %s116
      %p130 = scmp.eq.s32.totalorder %s21, 15
      %p131 = por %p129, %p130
      %p133 = scmp.ne.s32.totalorder %s116, %s132
      %p134 = scmp.eq.s32.totalorder %s21, 0
      %p135 = por %p133, %p134
      %s137 = sadd.s32 %s136, 1
      %p140 = scmp.eq.s32.totalorder %s15, 15
      %p141 = scmp.ne.s32.totalorder %s136, %s138
      %p142 = scmp.eq.s32.totalorder %s15, 0
      %p143 = por %p141, %p142
      %p144 = scmp.ne.s32.totalorder %s136, %s138
      %p145 = scmp.eq.s32.totalorder %s20, 15
      %p146 = por %p144, %p145
      %p147 = scmp.ne.s32.totalorder %s138, %s139
      %p148 = scmp.eq.s32.totalorder %s20, 0
      %p149 = por %p147, %p148
      %p150 = scmp.ne.s32.totalorder %s138, %s139
      %p151 = scmp.eq.s32.totalorder %s21, 15
      %p152 = por %p150, %p151
      %p154 = scmp.ne.s32.totalorder %s139, %s153
      %p155 = scmp.eq.s32.totalorder %s21, 0
      %p156 = por %p154, %p155
      %s157 = ssub.s32 %s22, %s34
      %p158 = scmp.eq.s32.totalorder %s157, 0
      %s160 = sadd.s32 %s159, 1
      %s161 = scalar_select %p158, %s159, %s160
      %p164 = pneg %p158
      %p165 = scmp.eq.s32.totalorder %s15, 15
      %p166 = por %p164, %p165
      %p167 = scmp.ne.s32.totalorder %s159, %s162
      %p168 = scmp.eq.s32.totalorder %s15, 0
      %p169 = por %p167, %p168
      %p170 = scmp.ne.s32.totalorder %s159, %s162
      %p171 = scmp.eq.s32.totalorder %s20, 15
      %p172 = por %p170, %p171
      %p173 = scmp.ne.s32.totalorder %s162, %s163
      %p174 = scmp.eq.s32.totalorder %s20, 0
      %p175 = por %p173, %p174
      %p176 = scmp.ne.s32.totalorder %s162, %s163
      %p177 = scmp.eq.s32.totalorder %s21, 15
      %p178 = por %p176, %p177
      %p180 = scmp.ne.s32.totalorder %s163, %s179
      %p181 = scmp.eq.s32.totalorder %s21, 0
      %p182 = por %p180, %p181
      %p183 = scmp.le.s32.totalorder 1, %s15
      %p184 = scmp.lt.s32.totalorder %s15, 17
      %p185 = pnand %p183, %p184
      %p186 = pneg %p185
      // Predicated region
      $region9: #{tpu_custom_call.1} parent=5 // pred_check
        _
      $region10: #{tpu_custom_call.1} parent=5 // pred_check_branch
        %188 = sbr.rel (%p185) target = $region12
      $region11: #{tpu_custom_call.1} parent=5 // pred_region
        %s189 = ssub.s32 %s15, 1
        // Predicated region
        $region13: #{tpu_custom_call.1} parent=11 // pred_check
          %p190 = pneg %p48
        $region14: #{tpu_custom_call.1} parent=11 // pred_check_branch
          %192 = sbr.rel (%p190) target = $region16
        $region15: #{tpu_custom_call.1} parent=11 // pred_region
          %s194 = ssub.s32 1024, 1024
          %195 = vsyncadd [#allocation4], %s194
          %s196 = sshll.u32 [#allocation3], 4
          %s197 = int_to_ptr.vmem [resolvable:$true] %s196
          %202 = dma.hbm_to_vmem [thread:$0]  %s0, 1024, %s197, [#allocation4], 64, 64, 4
        $region16: #{tpu_custom_call.1} parent=11 // pred_fallthru
          _
        // Predicated region
        $region17: #{tpu_custom_call.1} parent=11 // pred_check
          %p203 = pneg %p149
        $region18: #{tpu_custom_call.1} parent=11 // pred_check_branch
          %205 = sbr.rel (%p203) target = $region20
        $region19: #{tpu_custom_call.1} parent=11 // pred_region
          _
        $region20: #{tpu_custom_call.1} parent=11 // pred_fallthru
          _
      $region12: #{tpu_custom_call.1} parent=5 // pred_fallthru
        _
      %p206 = scmp.lt.s32.totalorder %s15, 16
      // Predicated region
      $region21: #{tpu_custom_call.1} parent=5 // pred_check
        %p207 = pneg %p206
      $region22: #{tpu_custom_call.1} parent=5 // pred_check_branch
        %209 = sbr.rel (%p207) target = $region24
      $region23: #{tpu_custom_call.1} parent=5 // pred_region
        // Predicated region
        $region25: #{tpu_custom_call.1} parent=23 // pred_check
          %p210 = pneg %p68
        $region26: #{tpu_custom_call.1} parent=23 // pred_check_branch
          %212 = sbr.rel (%p210) target = $region28
        $region27: #{tpu_custom_call.1} parent=23 // pred_region
          %s213 = smul.u32 16, %s23
          %p214 = scmp.lt.s32.totalorder %s213, 31
          %s215 = scalar_select %p214, %s213, 31
          %s216 = smul.addr %s215, 4
          %s217 = scalar_lea.vmem %s1, %s216
          %s218 = smul.u32 16, %s23
        $region28: #{tpu_custom_call.1} parent=23 // pred_fallthru
          _
        // Predicated region
        $region29: #{tpu_custom_call.1} parent=23 // pred_check
          %p219 = pneg %p94
        $region30: #{tpu_custom_call.1} parent=23 // pred_check_branch
          %221 = sbr.rel (%p219) target = $region32
        $region31: #{tpu_custom_call.1} parent=23 // pred_region
          %s222 = smul.u32 16, %s23
          %p223 = scmp.lt.s32.totalorder %s222, 31
          %s224 = scalar_select %p223, %s222, 31
          %s225 = smul.addr %s224, 8
          %s226 = scalar_lea.vmem %s2, %s225
          %s227 = smul.u32 16, %s23
        $region32: #{tpu_custom_call.1} parent=23 // pred_fallthru
          _
        // Predicated region
        $region33: #{tpu_custom_call.1} parent=23 // pred_check
          %p228 = pneg %p122
        $region34: #{tpu_custom_call.1} parent=23 // pred_check_branch
          %230 = sbr.rel (%p228) target = $region36
        $region35: #{tpu_custom_call.1} parent=23 // pred_region
          %s231 = sand.u32 %s112, 1
          %s232 = sand.u32 %s112, 1
          %s233 = smul.addr %s232, 8
          %s234 = scalar_lea.vmem [#allocation6], %s233
          %s235 = smul.u32 2, %s22
          %s236 = smul.addr %s235, 2
          %s237 = sadd.s32 %s23, %s236
          %s238 = smul.addr %s237, 4
          %s239 = scalar_lea.vmem %s3, %s238
          // Predicated region
          $region37: #{tpu_custom_call.1} parent=35 // pred_check
            _
          $region38: #{tpu_custom_call.1} parent=35 // pred_check_branch
            %241 = sbr.rel (0) target = $region40
          $region39: #{tpu_custom_call.1} parent=35 // pred_region
            // Predicated region
            $region41: #{tpu_custom_call.1} parent=39 // pred_check
              _
            $region42: #{tpu_custom_call.1} parent=39 // pred_check_branch
              %243 = sbr.rel target = $region44
            $region43: #{tpu_custom_call.1} parent=39 // pred_region
              // Predicated region
              $region56: #{tpu_custom_call.1} parent=43 // pred_check
                _
              $region57: #{tpu_custom_call.1} parent=43 // pred_check_branch
                %260 = sbr.rel (0) target = $region59
              $region58: #{tpu_custom_call.1} parent=43 // pred_region
                loop: start=0, step=1, limit=1
                $region60: #{tpu_custom_call.1} parent=58 // loop_pre_header
                  _
                $region61: #{tpu_custom_call.1} parent=58 // loop_header
                  %s262 = sphi 0, %s266
                  %p263 = scmp.ge.s32.totalorder %s262, 1
                  %s267 = sphi %s239, %s239
                  %s268 = sphi %s234, %s234
                $region62: #{tpu_custom_call.1} parent=58 // loop_header_branch
                  %265 = sbr.rel (%p263) target = $region66
                $region63: #{tpu_custom_call.1} parent=58 // loop_body
                  _
                $region64: #{tpu_custom_call.1} parent=58 // loop_footer
                  %s266 = sadd.s32 1, %s262
                $region65: #{tpu_custom_call.1} parent=58 // loop_footer_branch
                  %261 = sbr.rel target = $region61
                $region66: #{tpu_custom_call.1} parent=58 // loop_exit
                  _
                loop: start=0, step=1, limit=1
                $region67: #{tpu_custom_call.1} parent=58 // loop_pre_header
                  _
                $region68: #{tpu_custom_call.1} parent=58 // loop_header
                  %s271 = sphi 0, %s275
                  %p272 = scmp.ge.s32.totalorder %s271, 1
                  %s276 = sphi %s239, %s239
                  %s277 = sphi %s234, %s234
                $region69: #{tpu_custom_call.1} parent=58 // loop_header_branch
                  %274 = sbr.rel (%p272) target = $region73
                $region70: #{tpu_custom_call.1} parent=58 // loop_body
                  %v278 = vld [vmem:[%s276] sm:$0xf]
                  %279 = vst [vmem:[%s277] sm:$0xf] %v278
                  %v280 = vld [vmem:[%s276 + $0x8] sm:$0xf]
                  %281 = vst [vmem:[%s277 + $0x4] sm:$0xf] %v280
                $region71: #{tpu_custom_call.1} parent=58 // loop_footer
                  %s275 = sadd.s32 1, %s271
                $region72: #{tpu_custom_call.1} parent=58 // loop_footer_branch
                  %270 = sbr.rel target = $region68
                $region73: #{tpu_custom_call.1} parent=58 // loop_exit
                  _
              $region59: #{tpu_custom_call.1} parent=43 // pred_fallthru
                _
            $region44: #{tpu_custom_call.1} parent=39 // pred_fallthru
              _
            // Predicated region
            $region45: #{tpu_custom_call.1} parent=39 // pred_check
              _
            $region46: #{tpu_custom_call.1} parent=39 // pred_check_branch
              %245 = sbr.rel (0) target = $region48
            $region47: #{tpu_custom_call.1} parent=39 // pred_region
              loop: start=0, step=1, limit=1
              $region49: #{tpu_custom_call.1} parent=47 // loop_pre_header
                _
              $region50: #{tpu_custom_call.1} parent=47 // loop_header
                %s248 = sphi 0, %s252
                %p249 = scmp.ge.s32.totalorder %s248, 1
                %s253 = sphi %s239, %s239
                %s254 = sphi %s234, %s234
              $region51: #{tpu_custom_call.1} parent=47 // loop_header_branch
                %251 = sbr.rel (%p249) target = $region55
              $region52: #{tpu_custom_call.1} parent=47 // loop_body
                %v255 = vld [vmem:[%s253] sm:$0xf]
                %256 = vst [vmem:[%s254] sm:$0xf] %v255
                %v257 = vld [vmem:[%s253 + $0x8] sm:$0xf]
                %258 = vst [vmem:[%s254 + $0x4] sm:$0xf] %v257
              $region53: #{tpu_custom_call.1} parent=47 // loop_footer
                %s252 = sadd.s32 1, %s248
              $region54: #{tpu_custom_call.1} parent=47 // loop_footer_branch
                %247 = sbr.rel target = $region50
              $region55: #{tpu_custom_call.1} parent=47 // loop_exit
                _
            $region48: #{tpu_custom_call.1} parent=39 // pred_fallthru
              _
          $region40: #{tpu_custom_call.1} parent=35 // pred_fallthru
            _
          %282 = vnop
        $region36: #{tpu_custom_call.1} parent=23 // pred_fallthru
          _
      $region24: #{tpu_custom_call.1} parent=5 // pred_fallthru
        _
      %p283 = scmp.le.s32.totalorder 1, %s15
      %p284 = scmp.lt.s32.totalorder %s15, 17
      %p285 = pnand %p283, %p284
      %p286 = pneg %p285
      // Predicated region
      $region74: #{tpu_custom_call.1} parent=5 // pred_check
        _
      $region75: #{tpu_custom_call.1} parent=5 // pred_check_branch
        %288 = sbr.rel (%p285) target = $region77
      $region76: #{tpu_custom_call.1} parent=5 // pred_region
        %s289 = ssub.s32 %s15, 1
        // Predicated region
        $region78: #{tpu_custom_call.1} parent=76 // pred_check
          %p290 = pneg %p48
        $region79: #{tpu_custom_call.1} parent=76 // pred_check_branch
          %292 = sbr.rel (%p290) target = $region81
        $region80: #{tpu_custom_call.1} parent=76 // pred_region
          %293 = dma.done [#allocation4], 1024
        $region81: #{tpu_custom_call.1} parent=76 // pred_fallthru
          _
        %s294 = sand.u32 %s115, 1
        %s295 = sand.u32 %s115, 1
        %s296 = smul.addr %s295, 8
        %s297 = scalar_lea.vmem [#allocation6], %s296
        // Predicated region
        $region82: #{tpu_custom_call.1} parent=76 // pred_check
          %p298 = pneg %p128
        $region83: #{tpu_custom_call.1} parent=76 // pred_check_branch
          %300 = sbr.rel (%p298) target = $region85
        $region84: #{tpu_custom_call.1} parent=76 // pred_region
          _
        $region85: #{tpu_custom_call.1} parent=76 // pred_fallthru
          _
        %p301 = pneg %p48
        %p302 = pneg %p45
        %s303 = smul.u32 16, %s25
        %p304 = scmp.lt.s32.totalorder %s303, 31
        %s305 = scalar_select %p304, %s303, 31
        %s306 = smul.addr %s305, 4
        %s307 = scalar_lea.vmem %s1, %s306
        %p308 = pneg %p74
        %p309 = pneg %p71
        %s310 = smul.u32 16, %s25
        %p311 = scmp.lt.s32.totalorder %s310, 31
        %s312 = scalar_select %p311, %s310, 31
        %s313 = smul.addr %s312, 8
        %s314 = scalar_lea.vmem %s2, %s313
        %p315 = pneg %p100
        %p316 = pneg %p97
        %s317 = sand.u32 %s115, 1
        %s318 = sand.u32 %s115, 1
        %s319 = smul.addr %s318, 8
        %s320 = scalar_lea.vmem [#allocation6], %s319
        %p321 = pneg %p128
        %p322 = pneg %p125
        %p323 = pneg %p149
        %p324 = pneg %p146
        %p325 = pneg %p175
        %p326 = pneg %p172
        %s327 = sand.u32 %s162, 1
        %s328 = scalar_lea.sflag [#allocation5], %s327
        %s329 = sand.u32 %s162, 1
        %s330 = smul.addr %s329, 16
        %s331 = scalar_lea.vmem [#allocation7], %s330
        %s332 = smul.u32 16, %s25
        %p333 = scmp.lt.s32.totalorder %s332, 31
        %s334 = scalar_select %p333, %s332, 31
        %s335 = smul.addr %s334, 4
        %s336 = scalar_lea.vmem %s1, %s335
        %s337 = smul.u32 16, %s25
        %s338 = smul.u32 16, %s25
        %p339 = scmp.lt.s32.totalorder %s338, 31
        %s340 = scalar_select %p339, %s338, 31
        %s341 = smul.addr %s340, 8
        %s342 = scalar_lea.vmem %s2, %s341
        %s343 = smul.u32 16, %s25
        %s344 = smul.u32 2, %s24
        %s345 = smul.u32 2, %s24
        %p347 = scmp.eq.s32.totalorder %s25, 0
        // Predicated region
        $region86: #{tpu_custom_call.1} parent=76 // pred_check
          %p348 = pneg %p347
        $region87: #{tpu_custom_call.1} parent=76 // pred_check_branch
          %350 = sbr.rel (%p348) target = $region89
        $region88: #{tpu_custom_call.1} parent=76 // pred_region
          %351 = vst [vmem:[#allocation2] sm:$0xff] 0.0
          %352 = vst [vmem:[#allocation2 + $0x8] sm:$0xff] 0.0
        $region89: #{tpu_custom_call.1} parent=76 // pred_fallthru
          _
        %v353 = vld [vmem:[%s336] sm:$0xf]
        %v354 = vld [vmem:[%s336 + $0x4] sm:$0xf]
        %v355 = vld [vmem:[%s336 + $0x8] sm:$0xf]
        %v356 = vld [vmem:[%s336 + $0xc] sm:$0xf]
        %v357 = vld [vmem:[%s336 + $0x10] sm:$0xf]
        %v358 = vld [vmem:[%s336 + $0x14] sm:$0xf]
        %v359 = vld [vmem:[%s336 + $0x18] sm:$0xf]
        %v360 = vld [vmem:[%s336 + $0x1c] sm:$0xf]
        %v361 = vld [vmem:[%s336 + $0x20] sm:$0xf]
        %v362 = vld [vmem:[%s336 + $0x24] sm:$0xf]
        %v363 = vld [vmem:[%s336 + $0x28] sm:$0xf]
        %v364 = vld [vmem:[%s336 + $0x2c] sm:$0xf]
        %v365 = vld [vmem:[%s336 + $0x30] sm:$0xf]
        %v366 = vld [vmem:[%s336 + $0x34] sm:$0xf]
        %v367 = vld [vmem:[%s336 + $0x38] sm:$0xf]
        %v368 = vld [vmem:[%s336 + $0x3c] sm:$0xf]
        %v369 = vld [vmem:[#allocation3] sm:$0xf]
        %v370 = vld [vmem:[#allocation3 + $0x4] sm:$0xf]
        %v371 = vld [vmem:[#allocation3 + $0x8] sm:$0xf]
        %v372 = vld [vmem:[#allocation3 + $0xc] sm:$0xf]
        %v373 = vld [vmem:[#allocation3 + $0x10] sm:$0xf]
        %v374 = vld [vmem:[#allocation3 + $0x14] sm:$0xf]
        %v375 = vld [vmem:[#allocation3 + $0x18] sm:$0xf]
        %v376 = vld [vmem:[#allocation3 + $0x1c] sm:$0xf]
        %v377 = vld [vmem:[#allocation3 + $0x20] sm:$0xf]
        %v378 = vld [vmem:[#allocation3 + $0x24] sm:$0xf]
        %v379 = vld [vmem:[#allocation3 + $0x28] sm:$0xf]
        %v380 = vld [vmem:[#allocation3 + $0x2c] sm:$0xf]
        %v381 = vld [vmem:[#allocation3 + $0x30] sm:$0xf]
        %v382 = vld [vmem:[#allocation3 + $0x34] sm:$0xf]
        %v383 = vld [vmem:[#allocation3 + $0x38] sm:$0xf]
        %v384 = vld [vmem:[#allocation3 + $0x3c] sm:$0xf]
        %v401 = vunpack.c.l.b16 %v353
        %v402 = vunpack.c.l.b16 %v354
        %v403 = vunpack.c.l.b16 %v355
        %v404 = vunpack.c.l.b16 %v356
        %v405 = vunpack.c.l.b16 %v357
        %v406 = vunpack.c.l.b16 %v358
        %v407 = vunpack.c.l.b16 %v359
        %v408 = vunpack.c.l.b16 %v360
        %v409 = vunpack.c.l.b16 %v361
        %v410 = vunpack.c.l.b16 %v362
        %v411 = vunpack.c.l.b16 %v363
        %v412 = vunpack.c.l.b16 %v364
        %v413 = vunpack.c.l.b16 %v365
        %v414 = vunpack.c.l.b16 %v366
        %v415 = vunpack.c.l.b16 %v367
        %v416 = vunpack.c.l.b16 %v368
        %v417 = vpack.c.b16 %v402, %v401
        %v418 = vpack.c.b16 %v404, %v403
        %v419 = vpack.c.b16 %v406, %v405
        %v420 = vpack.c.b16 %v408, %v407
        %v421 = vpack.c.b16 %v410, %v409
        %v422 = vpack.c.b16 %v412, %v411
        %v423 = vpack.c.b16 %v414, %v413
        %v424 = vpack.c.b16 %v416, %v415
        %v449 = vunpack.c.l.b16 %v369
        %v450 = vunpack.c.l.b16 %v370
        %v451 = vunpack.c.l.b16 %v371
        %v452 = vunpack.c.l.b16 %v372
        %v453 = vunpack.c.l.b16 %v373
        %v454 = vunpack.c.l.b16 %v374
        %v455 = vunpack.c.l.b16 %v375
        %v456 = vunpack.c.l.b16 %v376
        %v457 = vunpack.c.l.b16 %v377
        %v458 = vunpack.c.l.b16 %v378
        %v459 = vunpack.c.l.b16 %v379
        %v460 = vunpack.c.l.b16 %v380
        %v461 = vunpack.c.l.b16 %v381
        %v462 = vunpack.c.l.b16 %v382
        %v463 = vunpack.c.l.b16 %v383
        %v464 = vunpack.c.l.b16 %v384
        %v465 = vpack.c.b16 %v450, %v449
        %v466 = vpack.c.b16 %v452, %v451
        %v467 = vpack.c.b16 %v454, %v453
        %v468 = vpack.c.b16 %v456, %v455
        %v469 = vpack.c.b16 %v458, %v457
        %v470 = vpack.c.b16 %v460, %v459
        %v471 = vpack.c.b16 %v462, %v461
        %v472 = vpack.c.b16 %v464, %v463
        %481 = vmatprep.subr.bf16.mxu0 0
        %482 = vmatpush1.bf16.msra.mxu0 %v465
        %483 = vmatprep.subr.bf16.mxu0 0
        %484 = vmatpush1.bf16.msra.mxu0 %v466
        %485 = vmatprep.subr.bf16.mxu0 0
        %486 = vmatpush1.bf16.msra.mxu0 %v467
        %487 = vmatprep.subr.bf16.mxu0 0
        %488 = vmatpush1.bf16.msra.mxu0 %v468
        %489 = vmatprep.subr.bf16.mxu0 0
        %490 = vmatpush1.bf16.msra.mxu0 %v469
        %491 = vmatprep.subr.bf16.mxu0 0
        %492 = vmatpush1.bf16.msra.mxu0 %v470
        %493 = vmatprep.subr.bf16.mxu0 0
        %494 = vmatpush1.bf16.msra.mxu0 %v471
        %495 = vmatprep.subr.bf16.mxu0 0
        %496 = vmatpush1.bf16.msra.mxu0 %v472
        %497 = vmatprep.subr.bf16.mxu0 0
        %498 = vmatpush1.bf16.msra.mxu0 0
        %499 = vmatprep.subr.bf16.mxu0 0
        %500 = vmatpush1.bf16.msra.mxu0 0
        %501 = vmatprep.subr.bf16.mxu0 0
        %502 = vmatpush1.bf16.msra.mxu0 0
        %503 = vmatprep.subr.bf16.mxu0 0
        %504 = vmatpush1.bf16.msra.mxu0 0
        %505 = vmatprep.subr.bf16.mxu0 0
        %506 = vmatpush1.bf16.msra.mxu0 0
        %507 = vmatprep.subr.bf16.mxu0 0
        %508 = vmatpush1.bf16.msra.mxu0 0
        %509 = vmatprep.subr.bf16.mxu0 0
        %510 = vmatpush1.bf16.msra.mxu0 0
        %511 = vmatprep.subr.bf16.mxu0 0
        %512 = vmatpush1.bf16.msra.mxu0 0
        %513 = vmatprep.mubr.bf16.mxu0 0
        %514 = vmatmul.mubr.bf16.gmra.mrb[0].mxu0 %v417
        %v515 = vpop.f32.mrb[0].mxu0
        %v516 = vadd.f32 0.0, %v515
        %v517 = vpop.f32.mrb[0].mxu0
        %v518 = vpop.f32.mrb[0].mxu0
        %v519 = vadd.f32 0.0, %v518
        %v520 = vpop.f32.mrb[0].mxu0
        %521 = vmatprep.mubr.bf16.mxu0 0
        %522 = vmatmul.mubr.bf16.gmra.mrb[0].mxu0 %v418
        %v523 = vpop.f32.mrb[0].mxu0
        %v524 = vadd.f32 0.0, %v523
        %v525 = vpop.f32.mrb[0].mxu0
        %v526 = vpop.f32.mrb[0].mxu0
        %v527 = vadd.f32 0.0, %v526
        %v528 = vpop.f32.mrb[0].mxu0
        %529 = vmatprep.mubr.bf16.mxu0 0
        %530 = vmatmul.mubr.bf16.gmra.mrb[0].mxu0 %v419
        %v531 = vpop.f32.mrb[0].mxu0
        %v532 = vadd.f32 0.0, %v531
        %v533 = vpop.f32.mrb[0].mxu0
        %v534 = vpop.f32.mrb[0].mxu0
        %v535 = vadd.f32 0.0, %v534
        %v536 = vpop.f32.mrb[0].mxu0
        %537 = vmatprep.mubr.bf16.mxu0 0
        %538 = vmatmul.mubr.bf16.gmra.mrb[0].mxu0 %v420
        %v539 = vpop.f32.mrb[0].mxu0
        %v540 = vadd.f32 0.0, %v539
        %v541 = vpop.f32.mrb[0].mxu0
        %v542 = vpop.f32.mrb[0].mxu0
        %v543 = vadd.f32 0.0, %v542
        %v544 = vpop.f32.mrb[0].mxu0
        %545 = vmatprep.mubr.bf16.mxu0 0
        %546 = vmatmul.mubr.bf16.gmra.mrb[0].mxu0 %v421
        %v547 = vpop.f32.mrb[0].mxu0
        %v548 = vadd.f32 0.0, %v547
        %v549 = vpop.f32.mrb[0].mxu0
        %v550 = vpop.f32.mrb[0].mxu0
        %v551 = vadd.f32 0.0, %v550
        %v552 = vpop.f32.mrb[0].mxu0
        %553 = vmatprep.mubr.bf16.mxu0 0
        %554 = vmatmul.mubr.bf16.gmra.mrb[0].mxu0 %v422
        %v555 = vpop.f32.mrb[0].mxu0
        %v556 = vadd.f32 0.0, %v555
        %v557 = vpop.f32.mrb[0].mxu0
        %v558 = vpop.f32.mrb[0].mxu0
        %v559 = vadd.f32 0.0, %v558
        %v560 = vpop.f32.mrb[0].mxu0
        %561 = vmatprep.mubr.bf16.mxu0 0
        %562 = vmatmul.mubr.bf16.gmra.mrb[0].mxu0 %v423
        %v563 = vpop.f32.mrb[0].mxu0
        %v564 = vadd.f32 0.0, %v563
        %v565 = vpop.f32.mrb[0].mxu0
        %v566 = vpop.f32.mrb[0].mxu0
        %v567 = vadd.f32 0.0, %v566
        %v568 = vpop.f32.mrb[0].mxu0
        %569 = vmatprep.mubr.bf16.mxu0 0
        %570 = vmatmul.mubr.bf16.gmra.mrb[0].mxu0 %v424
        %v571 = vpop.f32.mrb[0].mxu0
        %v572 = vadd.f32 0.0, %v571
        %v573 = vpop.f32.mrb[0].mxu0
        %v574 = vpop.f32.mrb[0].mxu0
        %v575 = vadd.f32 0.0, %v574
        %v576 = vpop.f32.mrb[0].mxu0
        %577 = vdwg.mxu0
        %v578 = vld [vmem:[%s342] sm:$0xff]
        %v579 = vld [vmem:[%s342 + $0x8] sm:$0xff]
        %v580 = vld [vmem:[%s342 + $0x10] sm:$0xff]
        %v581 = vld [vmem:[%s342 + $0x18] sm:$0xff]
        %v582 = vld [vmem:[%s342 + $0x20] sm:$0xff]
        %v583 = vld [vmem:[%s342 + $0x28] sm:$0xff]
        %v584 = vld [vmem:[%s342 + $0x30] sm:$0xff]
        %v585 = vld [vmem:[%s342 + $0x38] sm:$0xff]
        %v586 = vld [vmem:[%s342 + $0x40] sm:$0xff]
        %v587 = vld [vmem:[%s342 + $0x48] sm:$0xff]
        %v588 = vld [vmem:[%s342 + $0x50] sm:$0xff]
        %v589 = vld [vmem:[%s342 + $0x58] sm:$0xff]
        %v590 = vld [vmem:[%s342 + $0x60] sm:$0xff]
        %v591 = vld [vmem:[%s342 + $0x68] sm:$0xff]
        %v592 = vld [vmem:[%s342 + $0x70] sm:$0xff]
        %v593 = vld [vmem:[%s342 + $0x78] sm:$0xff]
        %610 = vrot.lane.b32.xlu0 %v516, 94
        %v611 = vpop.permute.xlu0 %610
        %612 = vrot.lane.b32.xlu0 %v519, 94
        %v613 = vpop.permute.xlu0 %612
        %614 = vrot.lane.b32.xlu0 %v524, 94
        %v615 = vpop.permute.xlu0 %614
        %616 = vrot.lane.b32.xlu0 %v527, 94
        %v617 = vpop.permute.xlu0 %616
        %618 = vrot.lane.b32.xlu0 %v532, 94
        %v619 = vpop.permute.xlu0 %618
        %620 = vrot.lane.b32.xlu0 %v535, 94
        %v621 = vpop.permute.xlu0 %620
        %622 = vrot.lane.b32.xlu0 %v540, 94
        %v623 = vpop.permute.xlu0 %622
        %624 = vrot.lane.b32.xlu0 %v543, 94
        %v625 = vpop.permute.xlu0 %624
        %626 = vrot.lane.b32.xlu0 %v548, 94
        %v627 = vpop.permute.xlu0 %626
        %628 = vrot.lane.b32.xlu0 %v551, 94
        %v629 = vpop.permute.xlu0 %628
        %630 = vrot.lane.b32.xlu0 %v556, 94
        %v631 = vpop.permute.xlu0 %630
        %632 = vrot.lane.b32.xlu0 %v559, 94
        %v633 = vpop.permute.xlu0 %632
        %634 = vrot.lane.b32.xlu0 %v564, 94
        %v635 = vpop.permute.xlu0 %634
        %636 = vrot.lane.b32.xlu0 %v567, 94
        %v637 = vpop.permute.xlu0 %636
        %638 = vrot.lane.b32.xlu0 %v572, 94
        %v639 = vpop.permute.xlu0 %638
        %640 = vrot.lane.b32.xlu0 %v575, 94
        %v641 = vpop.permute.xlu0 %640
        %v658 = vadd.f32 %v578, %v611
        %v659 = vadd.f32 %v579, %v613
        %v660 = vadd.f32 %v580, %v615
        %v661 = vadd.f32 %v581, %v617
        %v662 = vadd.f32 %v582, %v619
        %v663 = vadd.f32 %v583, %v621
        %v664 = vadd.f32 %v584, %v623
        %v665 = vadd.f32 %v585, %v625
        %v666 = vadd.f32 %v586, %v627
        %v667 = vadd.f32 %v587, %v629
        %v668 = vadd.f32 %v588, %v631
        %v669 = vadd.f32 %v589, %v633
        %v670 = vadd.f32 %v590, %v635
        %v671 = vadd.f32 %v591, %v637
        %v672 = vadd.f32 %v592, %v639
        %v673 = vadd.f32 %v593, %v641
        %vm674 = vcmp.gt.f32.partialorder %v658, 0.0
        %vm675 = vcmp.gt.f32.partialorder %v659, 0.0
        %vm676 = vcmp.gt.f32.partialorder %v660, 0.0
        %vm677 = vcmp.gt.f32.partialorder %v661, 0.0
        %vm678 = vcmp.gt.f32.partialorder %v662, 0.0
        %vm679 = vcmp.gt.f32.partialorder %v663, 0.0
        %vm680 = vcmp.gt.f32.partialorder %v664, 0.0
        %vm681 = vcmp.gt.f32.partialorder %v665, 0.0
        %vm682 = vcmp.gt.f32.partialorder %v666, 0.0
        %vm683 = vcmp.gt.f32.partialorder %v667, 0.0
        %vm684 = vcmp.gt.f32.partialorder %v668, 0.0
        %vm685 = vcmp.gt.f32.partialorder %v669, 0.0
        %vm686 = vcmp.gt.f32.partialorder %v670, 0.0
        %vm687 = vcmp.gt.f32.partialorder %v671, 0.0
        %vm688 = vcmp.gt.f32.partialorder %v672, 0.0
        %vm689 = vcmp.gt.f32.partialorder %v673, 0.0
        %v690 = vmul.f32 %v658, 0.2
        %v691 = vmul.f32 %v659, 0.2
        %v692 = vmul.f32 %v660, 0.2
        %v693 = vmul.f32 %v661, 0.2
        %v694 = vmul.f32 %v662, 0.2
        %v695 = vmul.f32 %v663, 0.2
        %v696 = vmul.f32 %v664, 0.2
        %v697 = vmul.f32 %v665, 0.2
        %v698 = vmul.f32 %v666, 0.2
        %v699 = vmul.f32 %v667, 0.2
        %v700 = vmul.f32 %v668, 0.2
        %v701 = vmul.f32 %v669, 0.2
        %v702 = vmul.f32 %v670, 0.2
        %v703 = vmul.f32 %v671, 0.2
        %v704 = vmul.f32 %v672, 0.2
        %v705 = vmul.f32 %v673, 0.2
        %v706 = vsel %vm674, %v658, %v690
        %v707 = vsel %vm675, %v659, %v691
        %v708 = vsel %vm676, %v660, %v692
        %v709 = vsel %vm677, %v661, %v693
        %v710 = vsel %vm678, %v662, %v694
        %v711 = vsel %vm679, %v663, %v695
        %v712 = vsel %vm680, %v664, %v696
        %v713 = vsel %vm681, %v665, %v697
        %v714 = vsel %vm682, %v666, %v698
        %v715 = vsel %vm683, %v667, %v699
        %v716 = vsel %vm684, %v668, %v700
        %v717 = vsel %vm685, %v669, %v701
        %v718 = vsel %vm686, %v670, %v702
        %v719 = vsel %vm687, %v671, %v703
        %v720 = vsel %vm688, %v672, %v704
        %v721 = vsel %vm689, %v673, %v705
        %v722 = vmul.f32 %v706, 1.442695
        %v723 = vpow.pop %v722
        %v724 = vmul.f32 %v707, 1.442695
        %v725 = vpow.pop %v724
        %v726 = vmul.f32 %v708, 1.442695
        %v727 = vpow.pop %v726
        %v728 = vmul.f32 %v709, 1.442695
        %v729 = vpow.pop %v728
        %v730 = vmul.f32 %v710, 1.442695
        %v731 = vpow.pop %v730
        %v732 = vmul.f32 %v711, 1.442695
        %v733 = vpow.pop %v732
        %v734 = vmul.f32 %v712, 1.442695
        %v735 = vpow.pop %v734
        %v736 = vmul.f32 %v713, 1.442695
        %v737 = vpow.pop %v736
        %v738 = vmul.f32 %v714, 1.442695
        %v739 = vpow.pop %v738
        %v740 = vmul.f32 %v715, 1.442695
        %v741 = vpow.pop %v740
        %v742 = vmul.f32 %v716, 1.442695
        %v743 = vpow.pop %v742
        %v744 = vmul.f32 %v717, 1.442695
        %v745 = vpow.pop %v744
        %v746 = vmul.f32 %v718, 1.442695
        %v747 = vpow.pop %v746
        %v748 = vmul.f32 %v719, 1.442695
        %v749 = vpow.pop %v748
        %v750 = vmul.f32 %v720, 1.442695
        %v751 = vpow.pop %v750
        %v752 = vmul.f32 %v721, 1.442695
        %v753 = vpow.pop %v752
        %v754 = vld [vmem:[%s4] sm:$0x3]
        %vm755 = vcmask 15360
        %v757 = vsel %vm755, %v723, 0
        %v760 = vsel %vm755, %v725, 0
        %v763 = vsel %vm755, %v727, 0
        %v766 = vsel %vm755, %v729, 0
        %v769 = vsel %vm755, %v731, 0
        %v772 = vsel %vm755, %v733, 0
        %v775 = vsel %vm755, %v735, 0
        %v778 = vsel %vm755, %v737, 0
        %v781 = vsel %vm755, %v739, 0
        %v784 = vsel %vm755, %v741, 0
        %v787 = vsel %vm755, %v743, 0
        %v790 = vsel %vm755, %v745, 0
        %v793 = vsel %vm755, %v747, 0
        %v796 = vsel %vm755, %v749, 0
        %v799 = vsel %vm755, %v751, 0
        %v802 = vsel %vm755, %v753, 0
        %vm804 = vcmask 1041408
        %v806 = vsel %vm804, %v754, 0
        %808 = vmatprep.subr.mxu0 0.0
        %809 = vmatpush1.msra.mxu0 %v806
        %810 = vmatprep.subr.mxu0 0.0
        %811 = vmatpush1.msra.mxu0 0.0
        %812 = vmatprep.subr.mxu0 0.0
        %813 = vmatpush1.msra.mxu0 0.0
        %814 = vmatprep.subr.mxu0 0.0
        %815 = vmatpush1.msra.mxu0 0.0
        %816 = vmatprep.subr.mxu0 0.0
        %817 = vmatpush1.msra.mxu0 0.0
        %818 = vmatprep.subr.mxu0 0.0
        %819 = vmatpush1.msra.mxu0 0.0
        %820 = vmatprep.subr.mxu0 0.0
        %821 = vmatpush1.msra.mxu0 0.0
        %822 = vmatprep.subr.mxu0 0.0
        %823 = vmatpush1.msra.mxu0 0.0
        %824 = vmatprep.subr.mxu0 0.0
        %825 = vmatpush1.msra.mxu0 0.0
        %826 = vmatprep.subr.mxu0 0.0
        %827 = vmatpush1.msra.mxu0 0.0
        %828 = vmatprep.subr.mxu0 0.0
        %829 = vmatpush1.msra.mxu0 0.0
        %830 = vmatprep.subr.mxu0 0.0
        %831 = vmatpush1.msra.mxu0 0.0
        %832 = vmatprep.subr.mxu0 0.0
        %833 = vmatpush1.msra.mxu0 0.0
        %834 = vmatprep.subr.mxu0 0.0
        %835 = vmatpush1.msra.mxu0 0.0
        %836 = vmatprep.subr.mxu0 0.0
        %837 = vmatpush1.msra.mxu0 0.0
        %838 = vmatprep.subr.mxu0 0.0
        %839 = vmatpush1.msra.mxu0 0.0
        %840 = vmatprep.subr.mxu0 0.0
        %841 = vmatpush1.msra.mxu0 0.0
        %842 = vmatprep.subr.mxu0 0.0
        %843 = vmatpush1.msra.mxu0 0.0
        %844 = vmatprep.subr.mxu0 0.0
        %845 = vmatpush1.msra.mxu0 0.0
        %846 = vmatprep.subr.mxu0 0.0
        %847 = vmatpush1.msra.mxu0 0.0
        %848 = vmatprep.subr.mxu0 0.0
        %849 = vmatpush1.msra.mxu0 0.0
        %850 = vmatprep.subr.mxu0 0.0
        %851 = vmatpush1.msra.mxu0 0.0
        %852 = vmatprep.subr.mxu0 0.0
        %853 = vmatpush1.msra.mxu0 0.0
        %854 = vmatprep.subr.mxu0 0.0
        %855 = vmatpush1.msra.mxu0 0.0
        %856 = vmatprep.subr.mxu0 0.0
        %857 = vmatpush1.msra.mxu0 0.0
        %858 = vmatprep.subr.mxu0 0.0
        %859 = vmatpush1.msra.mxu0 0.0
        %860 = vmatprep.subr.mxu0 0.0
        %861 = vmatpush1.msra.mxu0 0.0
        %862 = vmatprep.subr.mxu0 0.0
        %863 = vmatpush1.msra.mxu0 0.0
        %864 = vmatprep.subr.mxu0 0.0
        %865 = vmatpush1.msra.mxu0 0.0
        %866 = vmatprep.subr.mxu0 0.0
        %867 = vmatpush1.msra.mxu0 0.0
        %868 = vmatprep.subr.mxu0 0.0
        %869 = vmatpush1.msra.mxu0 0.0
        %870 = vmatprep.subr.mxu0 0.0
        %871 = vmatpush1.msra.mxu0 0.0
        %872 = vmatprep.mubr.f32.mxu0 0.0
        %873 = vmatmul.mubr.f32.gmra.mrb[0].mxu0 %v757
        %v874 = vpop.f32.mrb[0].mxu0
        %v875 = vadd.f32 0.0, %v874
        %v876 = vpop.f32.mrb[0].mxu0
        %877 = vmatprep.mubr.f32.mxu0 0.0
        %878 = vmatmul.mubr.f32.gmra.mrb[0].mxu0 %v760
        %v879 = vpop.f32.mrb[0].mxu0
        %v880 = vadd.f32 0.0, %v879
        %v881 = vpop.f32.mrb[0].mxu0
        %882 = vmatprep.mubr.f32.mxu0 0.0
        %883 = vmatmul.mubr.f32.gmra.mrb[0].mxu0 %v763
        %v884 = vpop.f32.mrb[0].mxu0
        %v885 = vadd.f32 0.0, %v884
        %v886 = vpop.f32.mrb[0].mxu0
        %887 = vmatprep.mubr.f32.mxu0 0.0
        %888 = vmatmul.mubr.f32.gmra.mrb[0].mxu0 %v766
        %v889 = vpop.f32.mrb[0].mxu0
        %v890 = vadd.f32 0.0, %v889
        %v891 = vpop.f32.mrb[0].mxu0
        %892 = vmatprep.mubr.f32.mxu0 0.0
        %893 = vmatmul.mubr.f32.gmra.mrb[0].mxu0 %v769
        %v894 = vpop.f32.mrb[0].mxu0
        %v895 = vadd.f32 0.0, %v894
        %v896 = vpop.f32.mrb[0].mxu0
        %897 = vmatprep.mubr.f32.mxu0 0.0
        %898 = vmatmul.mubr.f32.gmra.mrb[0].mxu0 %v772
        %v899 = vpop.f32.mrb[0].mxu0
        %v900 = vadd.f32 0.0, %v899
        %v901 = vpop.f32.mrb[0].mxu0
        %902 = vmatprep.mubr.f32.mxu0 0.0
        %903 = vmatmul.mubr.f32.gmra.mrb[0].mxu0 %v775
        %v904 = vpop.f32.mrb[0].mxu0
        %v905 = vadd.f32 0.0, %v904
        %v906 = vpop.f32.mrb[0].mxu0
        %907 = vmatprep.mubr.f32.mxu0 0.0
        %908 = vmatmul.mubr.f32.gmra.mrb[0].mxu0 %v778
        %v909 = vpop.f32.mrb[0].mxu0
        %v910 = vadd.f32 0.0, %v909
        %v911 = vpop.f32.mrb[0].mxu0
        %912 = vmatprep.mubr.f32.mxu0 0.0
        %913 = vmatmul.mubr.f32.gmra.mrb[0].mxu0 %v781
        %v914 = vpop.f32.mrb[0].mxu0
        %v915 = vadd.f32 0.0, %v914
        %v916 = vpop.f32.mrb[0].mxu0
        %917 = vmatprep.mubr.f32.mxu0 0.0
        %918 = vmatmul.mubr.f32.gmra.mrb[0].mxu0 %v784
        %v919 = vpop.f32.mrb[0].mxu0
        %v920 = vadd.f32 0.0, %v919
        %v921 = vpop.f32.mrb[0].mxu0
        %922 = vmatprep.mubr.f32.mxu0 0.0
        %923 = vmatmul.mubr.f32.gmra.mrb[0].mxu0 %v787
        %v924 = vpop.f32.mrb[0].mxu0
        %v925 = vadd.f32 0.0, %v924
        %v926 = vpop.f32.mrb[0].mxu0
        %927 = vmatprep.mubr.f32.mxu0 0.0
        %928 = vmatmul.mubr.f32.gmra.mrb[0].mxu0 %v790
        %v929 = vpop.f32.mrb[0].mxu0
        %v930 = vadd.f32 0.0, %v929
        %v931 = vpop.f32.mrb[0].mxu0
        %932 = vmatprep.mubr.f32.mxu0 0.0
        %933 = vmatmul.mubr.f32.gmra.mrb[0].mxu0 %v793
        %v934 = vpop.f32.mrb[0].mxu0
        %v935 = vadd.f32 0.0, %v934
        %v936 = vpop.f32.mrb[0].mxu0
        %937 = vmatprep.mubr.f32.mxu0 0.0
        %938 = vmatmul.mubr.f32.gmra.mrb[0].mxu0 %v796
        %v939 = vpop.f32.mrb[0].mxu0
        %v940 = vadd.f32 0.0, %v939
        %v941 = vpop.f32.mrb[0].mxu0
        %942 = vmatprep.mubr.f32.mxu0 0.0
        %943 = vmatmul.mubr.f32.gmra.mrb[0].mxu0 %v799
        %v944 = vpop.f32.mrb[0].mxu0
        %v945 = vadd.f32 0.0, %v944
        %v946 = vpop.f32.mrb[0].mxu0
        %947 = vmatprep.mubr.f32.mxu0 0.0
        %948 = vmatmul.mubr.f32.gmra.mrb[0].mxu0 %v802
        %v949 = vpop.f32.mrb[0].mxu0
        %v950 = vadd.f32 0.0, %v949
        %v951 = vpop.f32.mrb[0].mxu0
        %952 = vdwg.mxu0
        %v953 = vmul.f32 %v875, %v516
        %v954 = vmul.f32 %v880, %v519
        %v955 = vmul.f32 %v885, %v524
        %v956 = vmul.f32 %v890, %v527
        %v957 = vmul.f32 %v895, %v532
        %v958 = vmul.f32 %v900, %v535
        %v959 = vmul.f32 %v905, %v540
        %v960 = vmul.f32 %v910, %v543
        %v961 = vmul.f32 %v915, %v548
        %v962 = vmul.f32 %v920, %v551
        %v963 = vmul.f32 %v925, %v556
        %v964 = vmul.f32 %v930, %v559
        %v965 = vmul.f32 %v935, %v564
        %v966 = vmul.f32 %v940, %v567
        %v967 = vmul.f32 %v945, %v572
        %v968 = vmul.f32 %v950, %v575
        %v969 = vpack.c.bf16 %v954, %v953
        %v970 = vpack.c.bf16 %v956, %v955
        %v971 = vpack.c.bf16 %v958, %v957
        %v972 = vpack.c.bf16 %v960, %v959
        %v973 = vpack.c.bf16 %v962, %v961
        %v974 = vpack.c.bf16 %v964, %v963
        %v975 = vpack.c.bf16 %v966, %v965
        %v976 = vpack.c.bf16 %v968, %v967
        %v977 = vld [vmem:[#allocation2] sm:$0xff]
        %v978 = vld [vmem:[#allocation2 + $0x8] sm:$0xff]
        %v979 = vld [vmem:[%s297] sm:$0xf]
        %v980 = vld [vmem:[%s297 + $0x4] sm:$0xf]
        %v983 = vunpack.c.l.b16 %v979
        %v984 = vunpack.c.l.b16 %v980
        %v985 = vpack.c.b16 %v984, %v983
        %987 = vmatprep.subr.bf16.mxu0 0
        %988 = vmatpush1.bf16.msra.mxu0 %v969
        %989 = vmatprep.subr.bf16.mxu0 0
        %990 = vmatpush1.bf16.msra.mxu0 %v970
        %991 = vmatprep.subr.bf16.mxu0 0
        %992 = vmatpush1.bf16.msra.mxu0 %v971
        %993 = vmatprep.subr.bf16.mxu0 0
        %994 = vmatpush1.bf16.msra.mxu0 %v972
        %995 = vmatprep.subr.bf16.mxu0 0
        %996 = vmatpush1.bf16.msra.mxu0 %v973
        %997 = vmatprep.subr.bf16.mxu0 0
        %998 = vmatpush1.bf16.msra.mxu0 %v974
        %999 = vmatprep.subr.bf16.mxu0 0
        %1000 = vmatpush1.bf16.msra.mxu0 %v975
        %1001 = vmatprep.subr.bf16.mxu0 0
        %1002 = vmatpush1.bf16.msra.mxu0 %v976
        %1003 = vmatprep.subr.bf16.mxu0 0
        %1004 = vmatpush1.bf16.msra.mxu0 0
        %1005 = vmatprep.subr.bf16.mxu0 0
        %1006 = vmatpush1.bf16.msra.mxu0 0
        %1007 = vmatprep.subr.bf16.mxu0 0
        %1008 = vmatpush1.bf16.msra.mxu0 0
        %1009 = vmatprep.subr.bf16.mxu0 0
        %1010 = vmatpush1.bf16.msra.mxu0 0
        %1011 = vmatprep.subr.bf16.mxu0 0
        %1012 = vmatpush1.bf16.msra.mxu0 0
        %1013 = vmatprep.subr.bf16.mxu0 0
        %1014 = vmatpush1.bf16.msra.mxu0 0
        %1015 = vmatprep.subr.bf16.mxu0 0
        %1016 = vmatpush1.bf16.msra.mxu0 0
        %1017 = vmatprep.subr.bf16.mxu0 0
        %1018 = vmatpush1.bf16.msra.mxu0 0
        %1019 = vmatprep.mubr.bf16.mxu0 0
        %1020 = vmatmul.mubr.bf16.gmra.mrb[0].mxu0 %v985
        %v1021 = vpop.f32.mrb[0].mxu0
        %v1022 = vadd.f32 0.0, %v1021
        %v1023 = vpop.f32.mrb[0].mxu0
        %v1024 = vpop.f32.mrb[0].mxu0
        %v1025 = vadd.f32 0.0, %v1024
        %v1026 = vpop.f32.mrb[0].mxu0
        %1027 = vdwg.mxu0
        %v1028 = vadd.f32 %v977, %v1022
        %v1029 = vadd.f32 %v978, %v1025
        %1030 = vst [vmem:[#allocation2] sm:$0xff] %v1028
        %1031 = vst [vmem:[#allocation2 + $0x8] sm:$0xff] %v1029
        %p1032 = scmp.eq.s32.totalorder %s25, 1
        // Predicated region
        $region90: #{tpu_custom_call.1} parent=76 // pred_check
          %p1033 = pneg %p1032
        $region91: #{tpu_custom_call.1} parent=76 // pred_check_branch
          %1035 = sbr.rel (%p1033) target = $region93
        $region92: #{tpu_custom_call.1} parent=76 // pred_region
          %v1036 = vld [vmem:[#allocation2] sm:$0xff]
          %v1037 = vld [vmem:[#allocation2 + $0x8] sm:$0xff]
          %v1038 = vld [vmem:[%s4] sm:$0x3]
          %1041 = vrot.lane.b32.xlu0 %v1036, 96
          %v1042 = vpop.permute.xlu0 %1041
          %1043 = vrot.lane.b32.xlu0 %v1037, 96
          %v1044 = vpop.permute.xlu0 %1043
          %v1045 = vsel %vm755, %v1042, 0
          %v1047 = vsel %vm755, %v1044, 0
          %v1050 = vsel %vm804, %v1038, 0
          %1052 = vmatprep.subr.mxu0 0.0
          %1053 = vmatpush1.msra.mxu0 %v1050
          %1054 = vmatprep.subr.mxu0 0.0
          %1055 = vmatpush1.msra.mxu0 0.0
          %1056 = vmatprep.subr.mxu0 0.0
          %1057 = vmatpush1.msra.mxu0 0.0
          %1058 = vmatprep.subr.mxu0 0.0
          %1059 = vmatpush1.msra.mxu0 0.0
          %1060 = vmatprep.subr.mxu0 0.0
          %1061 = vmatpush1.msra.mxu0 0.0
          %1062 = vmatprep.subr.mxu0 0.0
          %1063 = vmatpush1.msra.mxu0 0.0
          %1064 = vmatprep.subr.mxu0 0.0
          %1065 = vmatpush1.msra.mxu0 0.0
          %1066 = vmatprep.subr.mxu0 0.0
          %1067 = vmatpush1.msra.mxu0 0.0
          %1068 = vmatprep.subr.mxu0 0.0
          %1069 = vmatpush1.msra.mxu0 0.0
          %1070 = vmatprep.subr.mxu0 0.0
          %1071 = vmatpush1.msra.mxu0 0.0
          %1072 = vmatprep.subr.mxu0 0.0
          %1073 = vmatpush1.msra.mxu0 0.0
          %1074 = vmatprep.subr.mxu0 0.0
          %1075 = vmatpush1.msra.mxu0 0.0
          %1076 = vmatprep.subr.mxu0 0.0
          %1077 = vmatpush1.msra.mxu0 0.0
          %1078 = vmatprep.subr.mxu0 0.0
          %1079 = vmatpush1.msra.mxu0 0.0
          %1080 = vmatprep.subr.mxu0 0.0
          %1081 = vmatpush1.msra.mxu0 0.0
          %1082 = vmatprep.subr.mxu0 0.0
          %1083 = vmatpush1.msra.mxu0 0.0
          %1084 = vmatprep.subr.mxu0 0.0
          %1085 = vmatpush1.msra.mxu0 0.0
          %1086 = vmatprep.subr.mxu0 0.0
          %1087 = vmatpush1.msra.mxu0 0.0
          %1088 = vmatprep.subr.mxu0 0.0
          %1089 = vmatpush1.msra.mxu0 0.0
          %1090 = vmatprep.subr.mxu0 0.0
          %1091 = vmatpush1.msra.mxu0 0.0
          %1092 = vmatprep.subr.mxu0 0.0
          %1093 = vmatpush1.msra.mxu0 0.0
          %1094 = vmatprep.subr.mxu0 0.0
          %1095 = vmatpush1.msra.mxu0 0.0
          %1096 = vmatprep.subr.mxu0 0.0
          %1097 = vmatpush1.msra.mxu0 0.0
          %1098 = vmatprep.subr.mxu0 0.0
          %1099 = vmatpush1.msra.mxu0 0.0
          %1100 = vmatprep.subr.mxu0 0.0
          %1101 = vmatpush1.msra.mxu0 0.0
          %1102 = vmatprep.subr.mxu0 0.0
          %1103 = vmatpush1.msra.mxu0 0.0
          %1104 = vmatprep.subr.mxu0 0.0
          %1105 = vmatpush1.msra.mxu0 0.0
          %1106 = vmatprep.subr.mxu0 0.0
          %1107 = vmatpush1.msra.mxu0 0.0
          %1108 = vmatprep.subr.mxu0 0.0
          %1109 = vmatpush1.msra.mxu0 0.0
          %1110 = vmatprep.subr.mxu0 0.0
          %1111 = vmatpush1.msra.mxu0 0.0
          %1112 = vmatprep.subr.mxu0 0.0
          %1113 = vmatpush1.msra.mxu0 0.0
          %1114 = vmatprep.subr.mxu0 0.0
          %1115 = vmatpush1.msra.mxu0 0.0
          %1116 = vmatprep.mubr.f32.mxu0 0.0
          %1117 = vmatmul.mubr.f32.gmra.mrb[0].mxu0 %v1045
          %v1118 = vpop.f32.mrb[0].mxu0
          %v1119 = vadd.f32 0.0, %v1118
          %v1120 = vpop.f32.mrb[0].mxu0
          %1121 = vmatprep.mubr.f32.mxu0 0.0
          %1122 = vmatmul.mubr.f32.gmra.mrb[0].mxu0 %v1047
          %v1123 = vpop.f32.mrb[0].mxu0
          %v1124 = vadd.f32 0.0, %v1123
          %v1125 = vpop.f32.mrb[0].mxu0
          %1126 = vdwg.mxu0
          %vm1127 = vcmp.gt.f32.partialorder %v1119, 0.0
          %vm1128 = vcmp.gt.f32.partialorder %v1124, 0.0
          %v1129 = vsel %vm1127, %v1119, 1.0
          %v1130 = vsel %vm1128, %v1124, 1.0
          %v1131 = vrcp.pop %v1129
          %v1132 = vrcp.pop %v1130
          %v1133 = vmul.f32 %v1036, %v1131
          %v1134 = vmul.f32 %v1037, %v1132
          %1135 = vst [vmem:[%s331] sm:$0xff] %v1133
          %1136 = vst [vmem:[%s331 + $0x8] sm:$0xff] %v1134
        $region93: #{tpu_custom_call.1} parent=76 // pred_fallthru
          _
        %s1137 = sand.u32 %s162, 1
        %s1138 = scalar_lea.sflag [#allocation5], %s1137
        %s1139 = sand.u32 %s162, 1
        %s1140 = smul.addr %s1139, 16
        %s1141 = scalar_lea.vmem [#allocation7], %s1140
        // Predicated region
        $region94: #{tpu_custom_call.1} parent=76 // pred_check
          %p1142 = pneg %p172
        $region95: #{tpu_custom_call.1} parent=76 // pred_check_branch
          %1144 = sbr.rel (%p1142) target = $region97
        $region96: #{tpu_custom_call.1} parent=76 // pred_region
          %s1145 = smul.u32 2, %s24
          %s1147 = ssub.s32 256, 256
          %1148 = vsyncadd %s1138, %s1147
          %s1149 = smul.addr %s1145, 128
          %s1150 = scalar_lea.hbm %s5, %s1149
          %s1151 = sshll.u32 %s1141, 4
          %s1152 = int_to_ptr.vmem [resolvable:$true] %s1151
          %1157 = dma.vmem_to_hbm [thread:$0]  %s1152, 256, %s1150, %s1138, 128, 128, 8
        $region97: #{tpu_custom_call.1} parent=76 // pred_fallthru
          _
      $region77: #{tpu_custom_call.1} parent=5 // pred_fallthru
        _
      %p1158 = scmp.le.s32.totalorder 2, %s15
      // Predicated region
      $region98: #{tpu_custom_call.1} parent=5 // pred_check
        %p1159 = pneg %p1158
      $region99: #{tpu_custom_call.1} parent=5 // pred_check_branch
        %1161 = sbr.rel (%p1159) target = $region101
      $region100: #{tpu_custom_call.1} parent=5 // pred_region
        %s1162 = ssub.s32 %s15, 2
        // Predicated region
        $region102: #{tpu_custom_call.1} parent=100 // pred_check
          %p1163 = pneg %p178
        $region103: #{tpu_custom_call.1} parent=100 // pred_check_branch
          %1165 = sbr.rel (%p1163) target = $region105
        $region104: #{tpu_custom_call.1} parent=100 // pred_region
          %s1166 = sand.u32 %s163, 1
          %s1167 = scalar_lea.sflag [#allocation5], %s1166
          %s1168 = sand.u32 %s163, 1
          %s1169 = smul.addr %s1168, 16
          %s1170 = scalar_lea.vmem [#allocation7], %s1169
          %1171 = dma.done %s1167, 256
        $region105: #{tpu_custom_call.1} parent=100 // pred_fallthru
          _
      $region101: #{tpu_custom_call.1} parent=5 // pred_fallthru
        _
    $region6: #{tpu_custom_call.1} parent=1 // loop_footer
      %s19 = sadd.s32 1, %s15
    $region7: #{tpu_custom_call.1} parent=1 // loop_footer_branch
      %14 = sbr.rel target = $region3
    $region8: #{tpu_custom_call.1} parent=1 // loop_exit
      _
    %1172 = vsyncpa [#allocation4], 1
    %s1173 = scalar_lea.sflag [#allocation4], 1
    %1174 = vsyncpa %s1173, 1
    %1175 = vsyncpa [#allocation5], 1
    %s1176 = scalar_lea.sflag [#allocation5], 1
    %1177 = vsyncpa %s1176, 1

</llo_original>
